<compile_context>
chip_gen: v7x
topology: tpu7x:2x2x1
jax: 0.10.0
libtpu: 0.0.40
codegen_flags: <defaults>
</compile_context>

<pallas_src>
import functools

import jax
import jax.numpy as jnp
from jax.experimental import pallas as pl
from jax.experimental.pallas import tpu as pltpu


def _round_up(n, m):
    return ((n + m - 1) // m) * m


def mlp_kernel(x_ref, w1_ref, b1_ref, w2_ref, b2_ref, w3_ref, b3_ref, o_ref):
    # x tile: (TB, input_dim) f32 -> cast to bf16 in-kernel (free on the VPU).
    x = x_ref[...].astype(jnp.bfloat16)

    # Linear(input_dim -> hidden1) + ReLU   (Dropout = identity at inference)
    h1 = jnp.dot(x, w1_ref[...], preferred_element_type=jnp.float32) + b1_ref[...]
    h1 = jnp.maximum(h1, 0.0)

    # Linear(hidden1 -> hidden2) + ReLU     (Dropout = identity at inference)
    h2 = jnp.dot(h1.astype(jnp.bfloat16), w2_ref[...],
                 preferred_element_type=jnp.float32) + b2_ref[...]
    h2 = jnp.maximum(h2, 0.0)

    # Linear(hidden2 -> n_classes) — narrow (n_classes-wide) f32 store.
    out = jnp.dot(h2.astype(jnp.bfloat16), w3_ref[...],
                  preferred_element_type=jnp.float32) + b3_ref[...]
    o_ref[...] = out.astype(o_ref.dtype)


@functools.partial(jax.jit, static_argnames=("tb",))
def mlp_face_classifier(x, params, *, tb=1024):
    """x: (B, input_dim) f32.  params: w1,b1,w2,b2,w3,b3; weights stored (in, out)."""
    w1, b1 = params["w1"], params["b1"]
    w2, b2 = params["w2"], params["b2"]
    w3, b3 = params["w3"], params["b3"]

    # Accept PyTorch-style (out,) biases or (1, out); kernel wants (1, out) f32.
    def _bias(b):
        b = jnp.asarray(b, jnp.float32)
        return b.reshape(1, -1) if b.ndim == 1 else b

    b1_p, b2_p, b3_p = _bias(b1), _bias(b2), _bias(b3)
    w1_p = w1.astype(jnp.bfloat16)
    w2_p = w2.astype(jnp.bfloat16)
    w3_p = w3.astype(jnp.bfloat16)

    B, d_in = x.shape
    h1_dim = w1_p.shape[1]
    h2_dim = w2_p.shape[1]
    n_classes = w3_p.shape[1]

    # Batch tile: multiple of 8 sublanes.  For B > 8, cap the tile so the grid
    # has >= 2 steps (lets v7x's two TensorCores both work; no-op on v5e/v6e).
    tb = _round_up(max(tb, 8), 8)
    if B > 8:
        tb_eff = min(tb, _round_up(pl.cdiv(B, 2), 8))
    else:
        tb_eff = min(tb, _round_up(B, 8))
    grid = (pl.cdiv(B, tb_eff),)

    # Streamed per-tile operands: x and out.  Weights/biases: constant
    # index_map -> fetched once, VMEM-resident across all grid steps.
    in_specs = [
        pl.BlockSpec((tb_eff, d_in), lambda i: (i, 0)),     # x tile (f32 stream)
        pl.BlockSpec((d_in, h1_dim), lambda i: (0, 0)),     # w1 (resident)
        pl.BlockSpec((1, h1_dim), lambda i: (0, 0)),        # b1
        pl.BlockSpec((h1_dim, h2_dim), lambda i: (0, 0)),   # w2
        pl.BlockSpec((1, h2_dim), lambda i: (0, 0)),        # b2
        pl.BlockSpec((h2_dim, n_classes), lambda i: (0, 0)),  # w3
        pl.BlockSpec((1, n_classes), lambda i: (0, 0)),     # b3
    ]
    out_spec = pl.BlockSpec((tb_eff, n_classes), lambda i: (i, 0))

    itemsize = lambda a: jnp.dtype(a.dtype).itemsize
    flops = 2 * B * (d_in * h1_dim + h1_dim * h2_dim + h2_dim * n_classes)
    bytes_accessed = (
        x.size * itemsize(x)                                   # x stream in
        + B * n_classes * 4                                    # narrow f32 out
        + sum(w.size * itemsize(w) for w in (w1_p, w2_p, w3_p))  # weights (once)
        + sum(b.size * 4 for b in (b1_p, b2_p, b3_p))          # biases (once)
    )

    return pl.pallas_call(
        mlp_kernel,
        out_shape=jax.ShapeDtypeStruct((B, n_classes), jnp.float32),
        grid=grid,
        in_specs=in_specs,
        out_specs=out_spec,
        compiler_params=pltpu.CompilerParams(
            dimension_semantics=("parallel",),
        ),
        cost_estimate=pl.CostEstimate(
            flops=flops, transcendentals=0, bytes_accessed=bytes_accessed
        ),
    )(x, w1_p, b1_p, w2_p, b2_p, w3_p, b3_p)


def init_params(key, input_dim=100, hidden1=256, hidden2=128, n_classes=5):
    """Deterministic synthetic init (PyTorch-style uniform fan-in bounds)."""
    ks = jax.random.split(key, 6)

    def linear(kw, kb, fan_in, fan_out):
        bound = 1.0 / jnp.sqrt(fan_in)
        # weight stored as (in, out) so the kernel does x @ W; bf16 for the MXU
        w = jax.random.uniform(kw, (fan_in, fan_out), jnp.float32, -bound, bound)
        b = jax.random.uniform(kb, (fan_out,), jnp.float32, -bound, bound)
        return w.astype(jnp.bfloat16), b

    w1, b1 = linear(ks[0], ks[1], input_dim, hidden1)
    w2, b2 = linear(ks[2], ks[3], hidden1, hidden2)
    w3, b3 = linear(ks[4], ks[5], hidden2, n_classes)
    return {"w1": w1, "b1": b1, "w2": w2, "b2": b2, "w3": w3, "b3": b3}


def reference_forward(x, params):
    """Pure-JAX reference mirroring the kernel's bf16-operand / f32-accumulate math."""
    b1 = params["b1"].reshape(1, -1)
    b2 = params["b2"].reshape(1, -1)
    b3 = params["b3"].reshape(1, -1)
    h1 = jnp.dot(x.astype(jnp.bfloat16), params["w1"],
                 preferred_element_type=jnp.float32) + b1
    h1 = jnp.maximum(h1, 0.0)
    h2 = jnp.dot(h1.astype(jnp.bfloat16), params["w2"],
                 preferred_element_type=jnp.float32) + b2
    h2 = jnp.maximum(h2, 0.0)
    return jnp.dot(h2.astype(jnp.bfloat16), params["w3"],
                   preferred_element_type=jnp.float32) + b3


if __name__ == "__main__":
    key = jax.random.PRNGKey(0)
    k_params, k_x = jax.random.split(key)

    input_dim, hidden1, hidden2, n_classes = 100, 256, 128, 5
    batch = 13  # non-multiple of 8 -> exercises the cdiv partial last tile

    params = init_params(k_params, input_dim, hidden1, hidden2, n_classes)
    x = jax.random.normal(k_x, (batch, input_dim), jnp.float32)

    out = mlp_face_classifier(x, params)
    out = jax.block_until_ready(out)

    ref = reference_forward(x, params)
    assert out.shape == (batch, n_classes), out.shape
    assert jnp.allclose(out, ref, atol=1e-2, rtol=1e-2), (
        float(jnp.max(jnp.abs(out - ref)))
    )

    # TODO(synk): training-mode Dropout (stochastic masking via pltpu.prng_random_bits)
    # is intentionally omitted; forward here matches model.eval().

    print("KERNEL_OK")
</pallas_src>

<mosaic_0001>
module attributes {stable_mosaic.version = 11 : i64} {
  func.func @mlp_kernel(%arg0: i32, %arg1: memref<8x100xf32, #tpu.memory_space<vmem>>, %arg2: memref<100x256xbf16, #tpu.memory_space<vmem>>, %arg3: memref<1x256xf32, #tpu.memory_space<vmem>>, %arg4: memref<256x128xbf16, #tpu.memory_space<vmem>>, %arg5: memref<1x128xf32, #tpu.memory_space<vmem>>, %arg6: memref<128x5xbf16, #tpu.memory_space<vmem>>, %arg7: memref<1x5xf32, #tpu.memory_space<vmem>>, %arg8: memref<8x5xf32, #tpu.memory_space<vmem>>) attributes {dimension_semantics = [#tpu.dimension_semantics<parallel>], iteration_bounds = array<i64: 2>, scalar_prefetch = 0 : i64, scratch_operands = 0 : i64, tpu.core_type = #tpu.core_type<tc>, window_params = [{transform_indices = @transform_0, window_bounds = array<i64: 8, 100>}, {pipeline_mode = #tpu.pipeline_mode<synchronous>, transform_indices = @transform_1, window_bounds = array<i64: 100, 256>}, {pipeline_mode = #tpu.pipeline_mode<synchronous>, transform_indices = @transform_2, window_bounds = array<i64: 1, 256>}, {pipeline_mode = #tpu.pipeline_mode<synchronous>, transform_indices = @transform_3, window_bounds = array<i64: 256, 128>}, {pipeline_mode = #tpu.pipeline_mode<synchronous>, transform_indices = @transform_4, window_bounds = array<i64: 1, 128>}, {pipeline_mode = #tpu.pipeline_mode<synchronous>, transform_indices = @transform_5, window_bounds = array<i64: 128, 5>}, {pipeline_mode = #tpu.pipeline_mode<synchronous>, transform_indices = @transform_6, window_bounds = array<i64: 1, 5>}, {transform_indices = @transform_7, window_bounds = array<i64: 8, 5>}]} {
    %c0 = arith.constant 0 : index
    %c0_0 = arith.constant 0 : index
    %0 = vector.load %arg1[%c0, %c0_0] : memref<8x100xf32, #tpu.memory_space<vmem>>, vector<8x100xf32>
    %1 = arith.truncf %0 : vector<8x100xf32> to vector<8x100xbf16>
    %c0_1 = arith.constant 0 : index
    %c0_2 = arith.constant 0 : index
    %2 = vector.load %arg2[%c0_1, %c0_2] : memref<100x256xbf16, #tpu.memory_space<vmem>>, vector<100x256xbf16>
    %cst = arith.constant dense<0.000000e+00> : vector<8x256xf32>
    %3 = tpu.matmul %1, %2, %cst {dimension_numbers = #tpu.dot_dimension_numbers<[1], [0], [0], [1], [0, 0, 1, 1], [], []>} : vector<8x100xbf16>, vector<100x256xbf16>, vector<8x256xf32> -> vector<8x256xf32>
    %c0_3 = arith.constant 0 : index
    %c0_4 = arith.constant 0 : index
    %4 = vector.load %arg3[%c0_3, %c0_4] : memref<1x256xf32, #tpu.memory_space<vmem>>, vector<1x256xf32>
    %5 = vector.broadcast %4 : vector<1x256xf32> to vector<8x256xf32>
    %6 = arith.addf %3, %5 : vector<8x256xf32>
    %cst_5 = arith.constant 0.000000e+00 : f32
    %7 = vector.broadcast %cst_5 : f32 to vector<8x256xf32>
    %8 = arith.maximumf %6, %7 : vector<8x256xf32>
    %9 = arith.truncf %8 : vector<8x256xf32> to vector<8x256xbf16>
    %c0_6 = arith.constant 0 : index
    %c0_7 = arith.constant 0 : index
    %10 = vector.load %arg4[%c0_6, %c0_7] : memref<256x128xbf16, #tpu.memory_space<vmem>>, vector<256x128xbf16>
    %cst_8 = arith.constant dense<0.000000e+00> : vector<8x128xf32>
    %11 = tpu.matmul %9, %10, %cst_8 {dimension_numbers = #tpu.dot_dimension_numbers<[1], [0], [0], [1], [0, 0, 1, 1], [], []>} : vector<8x256xbf16>, vector<256x128xbf16>, vector<8x128xf32> -> vector<8x128xf32>
    %c0_9 = arith.constant 0 : index
    %c0_10 = arith.constant 0 : index
    %12 = vector.load %arg5[%c0_9, %c0_10] : memref<1x128xf32, #tpu.memory_space<vmem>>, vector<1x128xf32>
    %13 = vector.broadcast %12 : vector<1x128xf32> to vector<8x128xf32>
    %14 = arith.addf %11, %13 : vector<8x128xf32>
    %cst_11 = arith.constant 0.000000e+00 : f32
    %15 = vector.broadcast %cst_11 : f32 to vector<8x128xf32>
    %16 = arith.maximumf %14, %15 : vector<8x128xf32>
    %17 = arith.truncf %16 : vector<8x128xf32> to vector<8x128xbf16>
    %c0_12 = arith.constant 0 : index
    %c0_13 = arith.constant 0 : index
    %18 = vector.load %arg6[%c0_12, %c0_13] : memref<128x5xbf16, #tpu.memory_space<vmem>>, vector<128x5xbf16>
    %cst_14 = arith.constant dense<0.000000e+00> : vector<8x5xf32>
    %19 = tpu.matmul %17, %18, %cst_14 {dimension_numbers = #tpu.dot_dimension_numbers<[1], [0], [0], [1], [0, 0, 1, 1], [], []>} : vector<8x128xbf16>, vector<128x5xbf16>, vector<8x5xf32> -> vector<8x5xf32>
    %c0_15 = arith.constant 0 : index
    %c0_16 = arith.constant 0 : index
    %20 = vector.load %arg7[%c0_15, %c0_16] : memref<1x5xf32, #tpu.memory_space<vmem>>, vector<1x5xf32>
    %21 = vector.broadcast %20 : vector<1x5xf32> to vector<8x5xf32>
    %22 = arith.addf %19, %21 : vector<8x5xf32>
    %c0_17 = arith.constant 0 : index
    %c0_18 = arith.constant 0 : index
    %23 = vector.load %arg8[%c0_17, %c0_18] : memref<8x5xf32, #tpu.memory_space<vmem>>, vector<8x5xf32>
    tpu.vector_store %arg8[%c0_17, %c0_18], %22 {strides = array<i32>} : memref<8x5xf32, #tpu.memory_space<vmem>>, vector<8x5xf32>,
    return
  }
  func.func @transform_0(%arg0: i32) -> (i32, i32) {
    %c0_i32 = arith.constant 0 : i32
    %c0_i32_0 = arith.constant 0 : i32
    return %arg0, %c0_i32 : i32, i32
  }
  func.func @transform_1(%arg0: i32) -> (i32, i32) {
    %c0_i32 = arith.constant 0 : i32
    %c0_i32_0 = arith.constant 0 : i32
    %c0_i32_1 = arith.constant 0 : i32
    return %c0_i32, %c0_i32_0 : i32, i32
  }
  func.func @transform_2(%arg0: i32) -> (i32, i32) {
    %c0_i32 = arith.constant 0 : i32
    %c0_i32_0 = arith.constant 0 : i32
    %c0_i32_1 = arith.constant 0 : i32
    return %c0_i32, %c0_i32_0 : i32, i32
  }
  func.func @transform_3(%arg0: i32) -> (i32, i32) {
    %c0_i32 = arith.constant 0 : i32
    %c0_i32_0 = arith.constant 0 : i32
    %c0_i32_1 = arith.constant 0 : i32
    return %c0_i32, %c0_i32_0 : i32, i32
  }
  func.func @transform_4(%arg0: i32) -> (i32, i32) {
    %c0_i32 = arith.constant 0 : i32
    %c0_i32_0 = arith.constant 0 : i32
    %c0_i32_1 = arith.constant 0 : i32
    return %c0_i32, %c0_i32_0 : i32, i32
  }
  func.func @transform_5(%arg0: i32) -> (i32, i32) {
    %c0_i32 = arith.constant 0 : i32
    %c0_i32_0 = arith.constant 0 : i32
    %c0_i32_1 = arith.constant 0 : i32
    return %c0_i32, %c0_i32_0 : i32, i32
  }
  func.func @transform_6(%arg0: i32) -> (i32, i32) {
    %c0_i32 = arith.constant 0 : i32
    %c0_i32_0 = arith.constant 0 : i32
    %c0_i32_1 = arith.constant 0 : i32
    return %c0_i32, %c0_i32_0 : i32, i32
  }
  func.func @transform_7(%arg0: i32) -> (i32, i32) {
    %c0_i32 = arith.constant 0 : i32
    %c0_i32_0 = arith.constant 0 : i32
    return %arg0, %c0_i32 : i32, i32
  }
}

</mosaic_0001>

<llo_original>
// kernel: mlp_face_classifier.1
$region0: #{mlp_face_classifier.1}
  #allocation0 [shape = 'u32[]', space=smem, size = 0x4, offset = 0x4, fixed_abs, tag = 'smem constant byte address 0x4 - core index']
  #allocation1 [shape = 'u32[144,128]{1,0:T(1,128)}', space=vmem, size = 0x12000, scoped, tag = 'internal scratch']
  %s0 = inlined_call_operand.vmem [shape: f32[13,100], index: 0, kind: input, shape index: {}]
  %s1 = inlined_call_operand.hbm [shape: bf16[100,256], index: 1, kind: input, shape index: {}]
  %s2 = inlined_call_operand.vmem [shape: f32[1,256], index: 2, kind: input, shape index: {}]
  %s3 = inlined_call_operand.hbm [shape: bf16[256,128], index: 3, kind: input, shape index: {}]
  %s4 = inlined_call_operand.vmem [shape: f32[1,128], index: 4, kind: input, shape index: {}]
  %s5 = inlined_call_operand.vmem [shape: bf16[128,5], index: 5, kind: input, shape index: {}]
  %s6 = inlined_call_operand.vmem [shape: f32[1,5], index: 6, kind: input, shape index: {}]
  %s7 = inlined_call_operand.vmem [shape: f32[13,5], index: 7, kind: output, shape index: {}]
  %s8 = sld [smem:[#allocation0]]
  $region69: #{mlp_face_classifier.1} parent=0
    _
  %s10 = ssub.s32 1, %s8
  %s11 = scalar_select 0, %s10, %s8
  $region1: #{mlp_face_classifier.1} parent=0
    #allocation2 [shape = 'u8[53248]{0}', space=vmem, size = 0xd000, scoped, tag = 'input window, operand 1, single buffered']
    #allocation3 [shape = 's32[2]{0}', space=sflag, size = 0x8, scoped, tag = 'scoped memory for mlp_face_classifier.1']
    #allocation4 [shape = 'u8[65536]{0}', space=vmem, size = 0x10000, scoped, tag = 'input window, operand 3, single buffered']
    #allocation5 [shape = 's32[1]{0}', space=sflag, size = 0x4, scoped, tag = 'scoped memory for mlp_face_classifier.1']
    %12 = vsyncpa [#allocation3], 0
    %13 = vsyncpa [#allocation5], 0
    loop: start=0, step=1, limit=4
    $region2: #{mlp_face_classifier.1} parent=1 // loop_pre_header
      _
    $region3: #{mlp_face_classifier.1} parent=1 // loop_header
      %s15 = sphi 0, %s19
      %p16 = scmp.ge.s32.totalorder %s15, 4
      %s25 = sphi 0, %s27
      %s28 = sphi 0, %s25
      %s29 = sphi 0, %s28
      %s45 = sphi 0, %s29
      %s49 = sphi 0, %s49
      %s51 = sphi 0, %s49
      %s52 = sphi 0, %s51
      %s66 = sphi 0, %s52
      %s70 = sphi 0, %s70
      %s72 = sphi 0, %s70
      %s73 = sphi 0, %s72
      %s87 = sphi 0, %s73
      %s91 = sphi 0, %s91
      %s93 = sphi 0, %s91
      %s94 = sphi 0, %s93
      %s108 = sphi 0, %s94
      %s112 = sphi 0, %s112
      %s114 = sphi 0, %s112
      %s115 = sphi 0, %s114
      %s129 = sphi 0, %s115
      %s133 = sphi 0, %s133
      %s135 = sphi 0, %s133
      %s136 = sphi 0, %s135
      %s150 = sphi 0, %s136
      %s154 = sphi 0, %s154
      %s156 = sphi 0, %s154
      %s157 = sphi 0, %s156
      %s171 = sphi 0, %s157
      %s177 = sphi 0, %s179
      %s180 = sphi 0, %s177
      %s181 = sphi 0, %s180
      %s197 = sphi 0, %s181
    $region4: #{mlp_face_classifier.1} parent=1 // loop_header_branch
      %18 = sbr.rel (%p16) target = $region8
    $region5: #{mlp_face_classifier.1} parent=1 // loop_body
      %s20 = ssub.s32 %s15, 1
      %s21 = ssub.s32 %s15, 2
      %s22 = sadd.s32 %s15, 1
      %s23 = ssub.s32 %s15, %s22
      %p24 = scmp.eq.s32.totalorder %s23, 0
      %s26 = sadd.s32 %s25, 1
      %s27 = scalar_select %p24, %s25, %s26
      %p30 = pneg %p24
      %p31 = scmp.eq.s32.totalorder %s15, 1
      %p32 = por %p30, %p31
      %p33 = scmp.ne.s32.totalorder %s25, %s28
      %p34 = scmp.eq.s32.totalorder %s15, 0
      %p35 = por %p33, %p34
      %p36 = scmp.ne.s32.totalorder %s25, %s28
      %p37 = scmp.eq.s32.totalorder %s20, 1
      %p38 = por %p36, %p37
      %p39 = scmp.ne.s32.totalorder %s28, %s29
      %p40 = scmp.eq.s32.totalorder %s20, 0
      %p41 = por %p39, %p40
      %p42 = scmp.ne.s32.totalorder %s28, %s29
      %p43 = scmp.eq.s32.totalorder %s21, 1
      %p44 = por %p42, %p43
      %p46 = scmp.ne.s32.totalorder %s29, %s45
      %p47 = scmp.eq.s32.totalorder %s21, 0
      %p48 = por %p46, %p47
      %s50 = sadd.s32 %s49, 1
      %p53 = scmp.eq.s32.totalorder %s15, 1
      %p54 = scmp.ne.s32.totalorder %s49, %s51
      %p55 = scmp.eq.s32.totalorder %s15, 0
      %p56 = por %p54, %p55
      %p57 = scmp.ne.s32.totalorder %s49, %s51
      %p58 = scmp.eq.s32.totalorder %s20, 1
      %p59 = por %p57, %p58
      %p60 = scmp.ne.s32.totalorder %s51, %s52
      %p61 = scmp.eq.s32.totalorder %s20, 0
      %p62 = por %p60, %p61
      %p63 = scmp.ne.s32.totalorder %s51, %s52
      %p64 = scmp.eq.s32.totalorder %s21, 1
      %p65 = por %p63, %p64
      %p67 = scmp.ne.s32.totalorder %s52, %s66
      %p68 = scmp.eq.s32.totalorder %s21, 0
      %p69 = por %p67, %p68
      %s71 = sadd.s32 %s70, 1
      %p74 = scmp.eq.s32.totalorder %s15, 1
      %p75 = scmp.ne.s32.totalorder %s70, %s72
      %p76 = scmp.eq.s32.totalorder %s15, 0
      %p77 = por %p75, %p76
      %p78 = scmp.ne.s32.totalorder %s70, %s72
      %p79 = scmp.eq.s32.totalorder %s20, 1
      %p80 = por %p78, %p79
      %p81 = scmp.ne.s32.totalorder %s72, %s73
      %p82 = scmp.eq.s32.totalorder %s20, 0
      %p83 = por %p81, %p82
      %p84 = scmp.ne.s32.totalorder %s72, %s73
      %p85 = scmp.eq.s32.totalorder %s21, 1
      %p86 = por %p84, %p85
      %p88 = scmp.ne.s32.totalorder %s73, %s87
      %p89 = scmp.eq.s32.totalorder %s21, 0
      %p90 = por %p88, %p89
      %s92 = sadd.s32 %s91, 1
      %p95 = scmp.eq.s32.totalorder %s15, 1
      %p96 = scmp.ne.s32.totalorder %s91, %s93
      %p97 = scmp.eq.s32.totalorder %s15, 0
      %p98 = por %p96, %p97
      %p99 = scmp.ne.s32.totalorder %s91, %s93
      %p100 = scmp.eq.s32.totalorder %s20, 1
      %p101 = por %p99, %p100
      %p102 = scmp.ne.s32.totalorder %s93, %s94
      %p103 = scmp.eq.s32.totalorder %s20, 0
      %p104 = por %p102, %p103
      %p105 = scmp.ne.s32.totalorder %s93, %s94
      %p106 = scmp.eq.s32.totalorder %s21, 1
      %p107 = por %p105, %p106
      %p109 = scmp.ne.s32.totalorder %s94, %s108
      %p110 = scmp.eq.s32.totalorder %s21, 0
      %p111 = por %p109, %p110
      %s113 = sadd.s32 %s112, 1
      %p116 = scmp.eq.s32.totalorder %s15, 1
      %p117 = scmp.ne.s32.totalorder %s112, %s114
      %p118 = scmp.eq.s32.totalorder %s15, 0
      %p119 = por %p117, %p118
      %p120 = scmp.ne.s32.totalorder %s112, %s114
      %p121 = scmp.eq.s32.totalorder %s20, 1
      %p122 = por %p120, %p121
      %p123 = scmp.ne.s32.totalorder %s114, %s115
      %p124 = scmp.eq.s32.totalorder %s20, 0
      %p125 = por %p123, %p124
      %p126 = scmp.ne.s32.totalorder %s114, %s115
      %p127 = scmp.eq.s32.totalorder %s21, 1
      %p128 = por %p126, %p127
      %p130 = scmp.ne.s32.totalorder %s115, %s129
      %p131 = scmp.eq.s32.totalorder %s21, 0
      %p132 = por %p130, %p131
      %s134 = sadd.s32 %s133, 1
      %p137 = scmp.eq.s32.totalorder %s15, 1
      %p138 = scmp.ne.s32.totalorder %s133, %s135
      %p139 = scmp.eq.s32.totalorder %s15, 0
      %p140 = por %p138, %p139
      %p141 = scmp.ne.s32.totalorder %s133, %s135
      %p142 = scmp.eq.s32.totalorder %s20, 1
      %p143 = por %p141, %p142
      %p144 = scmp.ne.s32.totalorder %s135, %s136
      %p145 = scmp.eq.s32.totalorder %s20, 0
      %p146 = por %p144, %p145
      %p147 = scmp.ne.s32.totalorder %s135, %s136
      %p148 = scmp.eq.s32.totalorder %s21, 1
      %p149 = por %p147, %p148
      %p151 = scmp.ne.s32.totalorder %s136, %s150
      %p152 = scmp.eq.s32.totalorder %s21, 0
      %p153 = por %p151, %p152
      %s155 = sadd.s32 %s154, 1
      %p158 = scmp.eq.s32.totalorder %s15, 1
      %p159 = scmp.ne.s32.totalorder %s154, %s156
      %p160 = scmp.eq.s32.totalorder %s15, 0
      %p161 = por %p159, %p160
      %p162 = scmp.ne.s32.totalorder %s154, %s156
      %p163 = scmp.eq.s32.totalorder %s20, 1
      %p164 = por %p162, %p163
      %p165 = scmp.ne.s32.totalorder %s156, %s157
      %p166 = scmp.eq.s32.totalorder %s20, 0
      %p167 = por %p165, %p166
      %p168 = scmp.ne.s32.totalorder %s156, %s157
      %p169 = scmp.eq.s32.totalorder %s21, 1
      %p170 = por %p168, %p169
      %p172 = scmp.ne.s32.totalorder %s157, %s171
      %p173 = scmp.eq.s32.totalorder %s21, 0
      %p174 = por %p172, %p173
      %s175 = ssub.s32 %s15, %s22
      %p176 = scmp.eq.s32.totalorder %s175, 0
      %s178 = sadd.s32 %s177, 1
      %s179 = scalar_select %p176, %s177, %s178
      %p182 = pneg %p176
      %p183 = scmp.eq.s32.totalorder %s15, 1
      %p184 = por %p182, %p183
      %p185 = scmp.ne.s32.totalorder %s177, %s180
      %p186 = scmp.eq.s32.totalorder %s15, 0
      %p187 = por %p185, %p186
      %p188 = scmp.ne.s32.totalorder %s177, %s180
      %p189 = scmp.eq.s32.totalorder %s20, 1
      %p190 = por %p188, %p189
      %p191 = scmp.ne.s32.totalorder %s180, %s181
      %p192 = scmp.eq.s32.totalorder %s20, 0
      %p193 = por %p191, %p192
      %p194 = scmp.ne.s32.totalorder %s180, %s181
      %p195 = scmp.eq.s32.totalorder %s21, 1
      %p196 = por %p194, %p195
      %p198 = scmp.ne.s32.totalorder %s181, %s197
      %p199 = scmp.eq.s32.totalorder %s21, 0
      %p200 = por %p198, %p199
      %p201 = scmp.le.s32.totalorder 1, %s15
      %p202 = scmp.lt.s32.totalorder %s15, 3
      %p203 = pnand %p201, %p202
      %p204 = pneg %p203
      // Predicated region
      $region9: #{mlp_face_classifier.1} parent=5 // pred_check
        _
      $region10: #{mlp_face_classifier.1} parent=5 // pred_check_branch
        %206 = sbr.rel (%p203) target = $region12
      $region11: #{mlp_face_classifier.1} parent=5 // pred_region
        %s207 = ssub.s32 %s15, 1
        // Predicated region
        $region13: #{mlp_face_classifier.1} parent=11 // pred_check
          %p208 = pneg %p62
        $region14: #{mlp_face_classifier.1} parent=11 // pred_check_branch
          %210 = sbr.rel (%p208) target = $region16
        $region15: #{mlp_face_classifier.1} parent=11 // pred_region
          %s212 = ssub.s32 1664, 1664
          %213 = vsyncadd [#allocation3], %s212
          %s214 = sshll.u32 [#allocation2], 4
          %s215 = int_to_ptr.vmem [resolvable:$true] %s214
          %220 = dma.hbm_to_vmem [thread:$0]  %s1, 1664, %s215, [#allocation3], 128, 128, 8
        $region16: #{mlp_face_classifier.1} parent=11 // pred_fallthru
          _
        // Predicated region
        $region17: #{mlp_face_classifier.1} parent=11 // pred_check
          %p221 = pneg %p83
        $region18: #{mlp_face_classifier.1} parent=11 // pred_check_branch
          %223 = sbr.rel (%p221) target = $region20
        $region19: #{mlp_face_classifier.1} parent=11 // pred_region
          _
        $region20: #{mlp_face_classifier.1} parent=11 // pred_fallthru
          _
        // Predicated region
        $region21: #{mlp_face_classifier.1} parent=11 // pred_check
          %p224 = pneg %p104
        $region22: #{mlp_face_classifier.1} parent=11 // pred_check_branch
          %226 = sbr.rel (%p224) target = $region24
        $region23: #{mlp_face_classifier.1} parent=11 // pred_region
          %s228 = ssub.s32 2048, 2048
          %229 = vsyncadd [#allocation5], %s228
          %s230 = sshll.u32 [#allocation4], 4
          %s231 = int_to_ptr.vmem [resolvable:$true] %s230
          %236 = dma.hbm_to_vmem [thread:$0]  %s3, 2048, %s231, [#allocation5], 64, 64, 4
        $region24: #{mlp_face_classifier.1} parent=11 // pred_fallthru
          _
        // Predicated region
        $region25: #{mlp_face_classifier.1} parent=11 // pred_check
          %p237 = pneg %p125
        $region26: #{mlp_face_classifier.1} parent=11 // pred_check_branch
          %239 = sbr.rel (%p237) target = $region28
        $region27: #{mlp_face_classifier.1} parent=11 // pred_region
          _
        $region28: #{mlp_face_classifier.1} parent=11 // pred_fallthru
          _
        // Predicated region
        $region29: #{mlp_face_classifier.1} parent=11 // pred_check
          %p240 = pneg %p146
        $region30: #{mlp_face_classifier.1} parent=11 // pred_check_branch
          %242 = sbr.rel (%p240) target = $region32
        $region31: #{mlp_face_classifier.1} parent=11 // pred_region
          _
        $region32: #{mlp_face_classifier.1} parent=11 // pred_fallthru
          _
        // Predicated region
        $region33: #{mlp_face_classifier.1} parent=11 // pred_check
          %p243 = pneg %p167
        $region34: #{mlp_face_classifier.1} parent=11 // pred_check_branch
          %245 = sbr.rel (%p243) target = $region36
        $region35: #{mlp_face_classifier.1} parent=11 // pred_region
          _
        $region36: #{mlp_face_classifier.1} parent=11 // pred_fallthru
          _
      $region12: #{mlp_face_classifier.1} parent=5 // pred_fallthru
        _
      %p246 = scmp.lt.s32.totalorder %s15, 2
      // Predicated region
      $region37: #{mlp_face_classifier.1} parent=5 // pred_check
        %p247 = pneg %p246
      $region38: #{mlp_face_classifier.1} parent=5 // pred_check_branch
        %249 = sbr.rel (%p247) target = $region40
      $region39: #{mlp_face_classifier.1} parent=5 // pred_region
        // Predicated region
        $region41: #{mlp_face_classifier.1} parent=39 // pred_check
          %p250 = pneg %p35
        $region42: #{mlp_face_classifier.1} parent=39 // pred_check_branch
          %252 = sbr.rel (%p250) target = $region44
        $region43: #{mlp_face_classifier.1} parent=39 // pred_region
          %p253 = scmp.lt.s32.totalorder %s15, 1
          %s254 = scalar_select %p253, %s15, 1
          %s255 = smul.addr %s254, 8
          %s256 = scalar_lea.vmem %s0, %s255
        $region44: #{mlp_face_classifier.1} parent=39 // pred_fallthru
          _
      $region40: #{mlp_face_classifier.1} parent=5 // pred_fallthru
        _
      %p257 = scmp.le.s32.totalorder 1, %s15
      %p258 = scmp.lt.s32.totalorder %s15, 3
      %p259 = pnand %p257, %p258
      %p260 = pneg %p259
      // Predicated region
      $region45: #{mlp_face_classifier.1} parent=5 // pred_check
        _
      $region46: #{mlp_face_classifier.1} parent=5 // pred_check_branch
        %262 = sbr.rel (%p259) target = $region48
      $region47: #{mlp_face_classifier.1} parent=5 // pred_region
        %s263 = ssub.s32 %s15, 1
        // Predicated region
        $region49: #{mlp_face_classifier.1} parent=47 // pred_check
          %p264 = pneg %p62
        $region50: #{mlp_face_classifier.1} parent=47 // pred_check_branch
          %266 = sbr.rel (%p264) target = $region52
        $region51: #{mlp_face_classifier.1} parent=47 // pred_region
          %267 = dma.done [#allocation3], 1664
        $region52: #{mlp_face_classifier.1} parent=47 // pred_fallthru
          _
        // Predicated region
        $region53: #{mlp_face_classifier.1} parent=47 // pred_check
          %p268 = pneg %p104
        $region54: #{mlp_face_classifier.1} parent=47 // pred_check_branch
          %270 = sbr.rel (%p268) target = $region56
        $region55: #{mlp_face_classifier.1} parent=47 // pred_region
          %271 = dma.done [#allocation5], 2048
        $region56: #{mlp_face_classifier.1} parent=47 // pred_fallthru
          _
        %p272 = scmp.lt.s32.totalorder %s20, 1
        %s273 = scalar_select %p272, %s20, 1
        %s274 = smul.addr %s273, 8
        %s275 = scalar_lea.vmem %s0, %s274
        %p276 = pneg %p41
        %p277 = pneg %p38
        %p278 = pneg %p62
        %p279 = pneg %p59
        %p280 = pneg %p83
        %p281 = pneg %p80
        %p282 = pneg %p104
        %p283 = pneg %p101
        %p284 = pneg %p125
        %p285 = pneg %p122
        %p286 = pneg %p146
        %p287 = pneg %p143
        %p288 = pneg %p167
        %p289 = pneg %p164
        %p290 = pneg %p193
        %p291 = pneg %p190
        %p292 = scmp.lt.s32.totalorder %s20, 1
        %s293 = scalar_select %p292, %s20, 1
        %s294 = smul.addr %s293, 8
        %s295 = scalar_lea.vmem %s7, %s294
        %p296 = scmp.lt.s32.totalorder %s20, 1
        %s297 = scalar_select %p296, %s20, 1
        %s298 = smul.addr %s297, 8
        %s299 = scalar_lea.vmem %s0, %s298
        %p300 = scmp.lt.s32.totalorder %s20, 1
        %s301 = scalar_select %p300, %s20, 1
        %s302 = smul.addr %s301, 8
        %s303 = scalar_lea.vmem %s7, %s302
        %v305 = vld [vmem:[%s299] sm:$0xff]
        %v306 = vpack.c.bf16 %v305, %v305
        %v307 = vld [vmem:[#allocation2] sm:$0xff]
        %v308 = vld [vmem:[#allocation2 + $0x8] sm:$0xff]
        %v309 = vld [vmem:[#allocation2 + $0x10] sm:$0xff]
        %v310 = vld [vmem:[#allocation2 + $0x18] sm:$0xff]
        %v311 = vld [vmem:[#allocation2 + $0x20] sm:$0xff]
        %v312 = vld [vmem:[#allocation2 + $0x28] sm:$0xff]
        %v313 = vld [vmem:[#allocation2 + $0x30] sm:$0xff]
        %v314 = vld [vmem:[#allocation2 + $0x38] sm:$0xff]
        %v315 = vld [vmem:[#allocation2 + $0x40] sm:$0xff]
        %v316 = vld [vmem:[#allocation2 + $0x48] sm:$0xff]
        %v317 = vld [vmem:[#allocation2 + $0x50] sm:$0xff]
        %v318 = vld [vmem:[#allocation2 + $0x58] sm:$0xff]
        %v319 = vld [vmem:[#allocation2 + $0x60] sm:$0x33]
        %v320 = vld [vmem:[%s2] sm:$0x3]
        %v322 = vlaneseq
        %v323 = vshrl.u32 %v322, 7
        %v324 = vsub.s32 0, %v323
        %v325 = vrot.slane %v320, %v324
        %v326 = vlaneseq
        %v327 = vshrl.u32 %v326, 7
        %v328 = vsub.s32 1, %v327
        %v329 = vrot.slane %v320, %v328
        %v345 = vunpack.c.l.b16 %v307
        %v346 = vunpack.c.h.b16 %v307
        %v347 = vunpack.c.l.b16 %v308
        %v348 = vunpack.c.h.b16 %v308
        %v349 = vunpack.c.l.b16 %v309
        %v350 = vunpack.c.h.b16 %v309
        %v351 = vunpack.c.l.b16 %v310
        %v352 = vunpack.c.h.b16 %v310
        %v353 = vunpack.c.l.b16 %v311
        %v354 = vunpack.c.h.b16 %v311
        %v355 = vunpack.c.l.b16 %v312
        %v356 = vunpack.c.h.b16 %v312
        %v357 = vunpack.c.l.b16 %v313
        %v358 = vunpack.c.h.b16 %v313
        %v359 = vunpack.c.l.b16 %v314
        %v360 = vunpack.c.h.b16 %v314
        %v361 = vunpack.c.l.b16 %v315
        %v362 = vunpack.c.h.b16 %v315
        %v363 = vunpack.c.l.b16 %v316
        %v364 = vunpack.c.h.b16 %v316
        %v365 = vunpack.c.l.b16 %v317
        %v366 = vunpack.c.h.b16 %v317
        %v367 = vunpack.c.l.b16 %v318
        %v368 = vunpack.c.h.b16 %v318
        %v369 = vunpack.c.l.b16 %v319
        %v370 = vunpack.c.h.b16 %v319
        %v371 = vpack.c.b16 %v347, %v345
        %v372 = vpack.c.b16 %v348, %v346
        %v373 = vpack.c.b16 %v351, %v349
        %v374 = vpack.c.b16 %v352, %v350
        %v375 = vpack.c.b16 %v355, %v353
        %v376 = vpack.c.b16 %v356, %v354
        %v377 = vpack.c.b16 %v359, %v357
        %v378 = vpack.c.b16 %v360, %v358
        %v379 = vpack.c.b16 %v363, %v361
        %v380 = vpack.c.b16 %v364, %v362
        %v381 = vpack.c.b16 %v367, %v365
        %v382 = vpack.c.b16 %v368, %v366
        %v383 = vpack.c.b16 %v369, %v369
        %v384 = vpack.c.b16 %v370, %v370
        %vm397 = vcmask 818176
        %v399 = vsel %vm397, %v306, 0
        %vm401 = vcmask 1041408
        %v403 = vsel %vm401, %v383, 0
        %v406 = vsel %vm401, %v384, 0
        %408 = vmatprep.subr.bf16.mxu0 %v372
        %409 = vmatpush1.bf16.msra.mxu0 %v371
        %410 = vmatprep.subr.bf16.mxu0 %v374
        %411 = vmatpush1.bf16.msra.mxu0 %v373
        %412 = vmatprep.subr.bf16.mxu0 %v376
        %413 = vmatpush1.bf16.msra.mxu0 %v375
        %414 = vmatprep.subr.bf16.mxu0 %v378
        %415 = vmatpush1.bf16.msra.mxu0 %v377
        %416 = vmatprep.subr.bf16.mxu0 %v380
        %417 = vmatpush1.bf16.msra.mxu0 %v379
        %418 = vmatprep.subr.bf16.mxu0 %v382
        %419 = vmatpush1.bf16.msra.mxu0 %v381
        %420 = vmatprep.subr.bf16.mxu0 %v406
        %421 = vmatpush1.bf16.msra.mxu0 %v403
        %422 = vmatprep.subr.bf16.mxu0 0
        %423 = vmatpush1.bf16.msra.mxu0 0
        %424 = vmatprep.subr.bf16.mxu0 0
        %425 = vmatpush1.bf16.msra.mxu0 0
        %426 = vmatprep.subr.bf16.mxu0 0
        %427 = vmatpush1.bf16.msra.mxu0 0
        %428 = vmatprep.subr.bf16.mxu0 0
        %429 = vmatpush1.bf16.msra.mxu0 0
        %430 = vmatprep.subr.bf16.mxu0 0
        %431 = vmatpush1.bf16.msra.mxu0 0
        %432 = vmatprep.subr.bf16.mxu0 0
        %433 = vmatpush1.bf16.msra.mxu0 0
        %434 = vmatprep.subr.bf16.mxu0 0
        %435 = vmatpush1.bf16.msra.mxu0 0
        %436 = vmatprep.subr.bf16.mxu0 0
        %437 = vmatpush1.bf16.msra.mxu0 0
        %438 = vmatprep.subr.bf16.mxu0 0
        %439 = vmatpush1.bf16.msra.mxu0 0
        %440 = vmatprep.mubr.bf16.mxu0 0
        %441 = vmatmul.mubr.bf16.gmra.mrb[0].mxu0 %v399
        %v442 = vpop.f32.mrb[0].mxu0
        %v443 = vadd.f32 %v325, %v442
        %v444 = vpop.f32.mrb[0].mxu0
        %v445 = vadd.f32 %v329, %v444
        %v446 = vpop.f32.mrb[0].mxu0
        %v447 = vpop.f32.mrb[0].mxu0
        %448 = vdwg.mxu0
        %v449 = vmax.f32 %v443, 0.0
        %v450 = vmax.f32 %v445, 0.0
        %v451 = vpack.c.bf16 %v449, %v449
        %v452 = vpack.c.bf16 %v450, %v450
        %v453 = vld [vmem:[#allocation4] sm:$0xf]
        %v454 = vld [vmem:[#allocation4 + $0x4] sm:$0xf]
        %v455 = vld [vmem:[#allocation4 + $0x8] sm:$0xf]
        %v456 = vld [vmem:[#allocation4 + $0xc] sm:$0xf]
        %v457 = vld [vmem:[#allocation4 + $0x10] sm:$0xf]
        %v458 = vld [vmem:[#allocation4 + $0x14] sm:$0xf]
        %v459 = vld [vmem:[#allocation4 + $0x18] sm:$0xf]
        %v460 = vld [vmem:[#allocation4 + $0x1c] sm:$0xf]
        %v461 = vld [vmem:[#allocation4 + $0x20] sm:$0xf]
        %v462 = vld [vmem:[#allocation4 + $0x24] sm:$0xf]
        %v463 = vld [vmem:[#allocation4 + $0x28] sm:$0xf]
        %v464 = vld [vmem:[#allocation4 + $0x2c] sm:$0xf]
        %v465 = vld [vmem:[#allocation4 + $0x30] sm:$0xf]
        %v466 = vld [vmem:[#allocation4 + $0x34] sm:$0xf]
        %v467 = vld [vmem:[#allocation4 + $0x38] sm:$0xf]
        %v468 = vld [vmem:[#allocation4 + $0x3c] sm:$0xf]
        %v469 = vld [vmem:[#allocation4 + $0x40] sm:$0xf]
        %v470 = vld [vmem:[#allocation4 + $0x44] sm:$0xf]
        %v471 = vld [vmem:[#allocation4 + $0x48] sm:$0xf]
        %v472 = vld [vmem:[#allocation4 + $0x4c] sm:$0xf]
        %v473 = vld [vmem:[#allocation4 + $0x50] sm:$0xf]
        %v474 = vld [vmem:[#allocation4 + $0x54] sm:$0xf]
        %v475 = vld [vmem:[#allocation4 + $0x58] sm:$0xf]
        %v476 = vld [vmem:[#allocation4 + $0x5c] sm:$0xf]
        %v477 = vld [vmem:[#allocation4 + $0x60] sm:$0xf]
        %v478 = vld [vmem:[#allocation4 + $0x64] sm:$0xf]
        %v479 = vld [vmem:[#allocation4 + $0x68] sm:$0xf]
        %v480 = vld [vmem:[#allocation4 + $0x6c] sm:$0xf]
        %v481 = vld [vmem:[#allocation4 + $0x70] sm:$0xf]
        %v482 = vld [vmem:[#allocation4 + $0x74] sm:$0xf]
        %v483 = vld [vmem:[#allocation4 + $0x78] sm:$0xf]
        %v484 = vld [vmem:[#allocation4 + $0x7c] sm:$0xf]
        %v485 = vld [vmem:[%s4] sm:$0x1]
        %v487 = vlaneseq
        %v488 = vshrl.u32 %v487, 7
        %v489 = vsub.s32 0, %v488
        %v490 = vrot.slane %v485, %v489
        %v524 = vunpack.c.l.b16 %v453
        %v525 = vunpack.c.l.b16 %v454
        %v526 = vunpack.c.l.b16 %v455
        %v527 = vunpack.c.l.b16 %v456
        %v528 = vunpack.c.l.b16 %v457
        %v529 = vunpack.c.l.b16 %v458
        %v530 = vunpack.c.l.b16 %v459
        %v531 = vunpack.c.l.b16 %v460
        %v532 = vunpack.c.l.b16 %v461
        %v533 = vunpack.c.l.b16 %v462
        %v534 = vunpack.c.l.b16 %v463
        %v535 = vunpack.c.l.b16 %v464
        %v536 = vunpack.c.l.b16 %v465
        %v537 = vunpack.c.l.b16 %v466
        %v538 = vunpack.c.l.b16 %v467
        %v539 = vunpack.c.l.b16 %v468
        %v540 = vunpack.c.l.b16 %v469
        %v541 = vunpack.c.l.b16 %v470
        %v542 = vunpack.c.l.b16 %v471
        %v543 = vunpack.c.l.b16 %v472
        %v544 = vunpack.c.l.b16 %v473
        %v545 = vunpack.c.l.b16 %v474
        %v546 = vunpack.c.l.b16 %v475
        %v547 = vunpack.c.l.b16 %v476
        %v548 = vunpack.c.l.b16 %v477
        %v549 = vunpack.c.l.b16 %v478
        %v550 = vunpack.c.l.b16 %v479
        %v551 = vunpack.c.l.b16 %v480
        %v552 = vunpack.c.l.b16 %v481
        %v553 = vunpack.c.l.b16 %v482
        %v554 = vunpack.c.l.b16 %v483
        %v555 = vunpack.c.l.b16 %v484
        %v556 = vpack.c.b16 %v525, %v524
        %v557 = vpack.c.b16 %v527, %v526
        %v558 = vpack.c.b16 %v529, %v528
        %v559 = vpack.c.b16 %v531, %v530
        %v560 = vpack.c.b16 %v533, %v532
        %v561 = vpack.c.b16 %v535, %v534
        %v562 = vpack.c.b16 %v537, %v536
        %v563 = vpack.c.b16 %v539, %v538
        %v564 = vpack.c.b16 %v541, %v540
        %v565 = vpack.c.b16 %v543, %v542
        %v566 = vpack.c.b16 %v545, %v544
        %v567 = vpack.c.b16 %v547, %v546
        %v568 = vpack.c.b16 %v549, %v548
        %v569 = vpack.c.b16 %v551, %v550
        %v570 = vpack.c.b16 %v553, %v552
        %v571 = vpack.c.b16 %v555, %v554
        %588 = vmatprep.subr.bf16.mxu0 0
        %589 = vmatpush1.bf16.msra.mxu0 %v556
        %590 = vmatprep.subr.bf16.mxu0 0
        %591 = vmatpush1.bf16.msra.mxu0 %v557
        %592 = vmatprep.subr.bf16.mxu0 0
        %593 = vmatpush1.bf16.msra.mxu0 %v558
        %594 = vmatprep.subr.bf16.mxu0 0
        %595 = vmatpush1.bf16.msra.mxu0 %v559
        %596 = vmatprep.subr.bf16.mxu0 0
        %597 = vmatpush1.bf16.msra.mxu0 %v560
        %598 = vmatprep.subr.bf16.mxu0 0
        %599 = vmatpush1.bf16.msra.mxu0 %v561
        %600 = vmatprep.subr.bf16.mxu0 0
        %601 = vmatpush1.bf16.msra.mxu0 %v562
        %602 = vmatprep.subr.bf16.mxu0 0
        %603 = vmatpush1.bf16.msra.mxu0 %v563
        %604 = vmatprep.subr.bf16.mxu0 0
        %605 = vmatpush1.bf16.msra.mxu0 %v564
        %606 = vmatprep.subr.bf16.mxu0 0
        %607 = vmatpush1.bf16.msra.mxu0 %v565
        %608 = vmatprep.subr.bf16.mxu0 0
        %609 = vmatpush1.bf16.msra.mxu0 %v566
        %610 = vmatprep.subr.bf16.mxu0 0
        %611 = vmatpush1.bf16.msra.mxu0 %v567
        %612 = vmatprep.subr.bf16.mxu0 0
        %613 = vmatpush1.bf16.msra.mxu0 %v568
        %614 = vmatprep.subr.bf16.mxu0 0
        %615 = vmatpush1.bf16.msra.mxu0 %v569
        %616 = vmatprep.subr.bf16.mxu0 0
        %617 = vmatpush1.bf16.msra.mxu0 %v570
        %618 = vmatprep.subr.bf16.mxu0 0
        %619 = vmatpush1.bf16.msra.mxu0 %v571
        %620 = vmatprep.mubr.bf16.mxu0 %v452
        %621 = vmatmul.mubr.bf16.gmra.mrb[0].mxu0 %v451
        %v622 = vpop.f32.mrb[0].mxu0
        %v623 = vadd.f32 %v490, %v622
        %v624 = vpop.f32.mrb[0].mxu0
        %v625 = vpop.f32.mrb[0].mxu0
        %v626 = vpop.f32.mrb[0].mxu0
        %627 = vdwg.mxu0
        %v628 = vmax.f32 %v623, 0.0
        %v629 = vpack.c.bf16 %v628, %v628
        %v630 = vld [vmem:[%s5] sm:$0xf]
        %v631 = vld [vmem:[%s5 + $0x4] sm:$0xf]
        %v632 = vld [vmem:[%s5 + $0x8] sm:$0xf]
        %v633 = vld [vmem:[%s5 + $0xc] sm:$0xf]
        %v634 = vld [vmem:[%s5 + $0x10] sm:$0xf]
        %v635 = vld [vmem:[%s5 + $0x14] sm:$0xf]
        %v636 = vld [vmem:[%s5 + $0x18] sm:$0xf]
        %v637 = vld [vmem:[%s5 + $0x1c] sm:$0xf]
        %v638 = vld [vmem:[%s5 + $0x20] sm:$0xf]
        %v639 = vld [vmem:[%s5 + $0x24] sm:$0xf]
        %v640 = vld [vmem:[%s5 + $0x28] sm:$0xf]
        %v641 = vld [vmem:[%s5 + $0x2c] sm:$0xf]
        %v642 = vld [vmem:[%s5 + $0x30] sm:$0xf]
        %v643 = vld [vmem:[%s5 + $0x34] sm:$0xf]
        %v644 = vld [vmem:[%s5 + $0x38] sm:$0xf]
        %v645 = vld [vmem:[%s5 + $0x3c] sm:$0xf]
        %v646 = vld [vmem:[%s6] sm:$0x1]
        %v648 = vlaneseq
        %v649 = vshrl.u32 %v648, 7
        %v650 = vsub.s32 0, %v649
        %v651 = vrot.slane %v646, %v650
        %v669 = vunpack.c.l.b16 %v630
        %v670 = vunpack.c.l.b16 %v631
        %v671 = vunpack.c.l.b16 %v632
        %v672 = vunpack.c.l.b16 %v633
        %v673 = vunpack.c.l.b16 %v634
        %v674 = vunpack.c.l.b16 %v635
        %v675 = vunpack.c.l.b16 %v636
        %v676 = vunpack.c.l.b16 %v637
        %v677 = vunpack.c.l.b16 %v638
        %v678 = vunpack.c.l.b16 %v639
        %v679 = vunpack.c.l.b16 %v640
        %v680 = vunpack.c.l.b16 %v641
        %v681 = vunpack.c.l.b16 %v642
        %v682 = vunpack.c.l.b16 %v643
        %v683 = vunpack.c.l.b16 %v644
        %v684 = vunpack.c.l.b16 %v645
        %v685 = vpack.c.b16 %v670, %v669
        %v686 = vpack.c.b16 %v672, %v671
        %v687 = vpack.c.b16 %v674, %v673
        %v688 = vpack.c.b16 %v676, %v675
        %v689 = vpack.c.b16 %v678, %v677
        %v690 = vpack.c.b16 %v680, %v679
        %v691 = vpack.c.b16 %v682, %v681
        %v692 = vpack.c.b16 %v684, %v683
        %701 = vmatprep.subr.bf16.mxu0 0
        %702 = vmatpush1.bf16.msra.mxu0 %v685
        %703 = vmatprep.subr.bf16.mxu0 0
        %704 = vmatpush1.bf16.msra.mxu0 %v686
        %705 = vmatprep.subr.bf16.mxu0 0
        %706 = vmatpush1.bf16.msra.mxu0 %v687
        %707 = vmatprep.subr.bf16.mxu0 0
        %708 = vmatpush1.bf16.msra.mxu0 %v688
        %709 = vmatprep.subr.bf16.mxu0 0
        %710 = vmatpush1.bf16.msra.mxu0 %v689
        %711 = vmatprep.subr.bf16.mxu0 0
        %712 = vmatpush1.bf16.msra.mxu0 %v690
        %713 = vmatprep.subr.bf16.mxu0 0
        %714 = vmatpush1.bf16.msra.mxu0 %v691
        %715 = vmatprep.subr.bf16.mxu0 0
        %716 = vmatpush1.bf16.msra.mxu0 %v692
        %717 = vmatprep.subr.bf16.mxu0 0
        %718 = vmatpush1.bf16.msra.mxu0 0
        %719 = vmatprep.subr.bf16.mxu0 0
        %720 = vmatpush1.bf16.msra.mxu0 0
        %721 = vmatprep.subr.bf16.mxu0 0
        %722 = vmatpush1.bf16.msra.mxu0 0
        %723 = vmatprep.subr.bf16.mxu0 0
        %724 = vmatpush1.bf16.msra.mxu0 0
        %725 = vmatprep.subr.bf16.mxu0 0
        %726 = vmatpush1.bf16.msra.mxu0 0
        %727 = vmatprep.subr.bf16.mxu0 0
        %728 = vmatpush1.bf16.msra.mxu0 0
        %729 = vmatprep.subr.bf16.mxu0 0
        %730 = vmatpush1.bf16.msra.mxu0 0
        %731 = vmatprep.subr.bf16.mxu0 0
        %732 = vmatpush1.bf16.msra.mxu0 0
        %733 = vmatprep.mubr.bf16.mxu0 0
        %734 = vmatmul.mubr.bf16.gmra.mrb[0].mxu0 %v629
        %v735 = vpop.f32.mrb[0].mxu0
        %v736 = vadd.f32 %v651, %v735
        %v737 = vpop.f32.mrb[0].mxu0
        %v738 = vpop.f32.mrb[0].mxu0
        %v739 = vpop.f32.mrb[0].mxu0
        %740 = vdwg.mxu0
        %vm741 = vcmask 39936
        %742 = vst.msk [vmem:[%s303] sm:$0xff] %vm741, %v736
        %p743 = scmp.lt.s32.totalorder %s20, 1
        %s744 = scalar_select %p743, %s20, 1
        %s745 = smul.addr %s744, 8
        %s746 = scalar_lea.vmem %s7, %s745
        // Predicated region
        $region57: #{mlp_face_classifier.1} parent=47 // pred_check
          %p747 = pneg %p190
        $region58: #{mlp_face_classifier.1} parent=47 // pred_check_branch
          %749 = sbr.rel (%p747) target = $region60
        $region59: #{mlp_face_classifier.1} parent=47 // pred_region
          _
        $region60: #{mlp_face_classifier.1} parent=47 // pred_fallthru
          _
      $region48: #{mlp_face_classifier.1} parent=5 // pred_fallthru
        _
      %p750 = scmp.le.s32.totalorder 2, %s15
      // Predicated region
      $region61: #{mlp_face_classifier.1} parent=5 // pred_check
        %p751 = pneg %p750
      $region62: #{mlp_face_classifier.1} parent=5 // pred_check_branch
        %753 = sbr.rel (%p751) target = $region64
      $region63: #{mlp_face_classifier.1} parent=5 // pred_region
        %s754 = ssub.s32 %s15, 2
        // Predicated region
        $region65: #{mlp_face_classifier.1} parent=63 // pred_check
          %p755 = pneg %p196
        $region66: #{mlp_face_classifier.1} parent=63 // pred_check_branch
          %757 = sbr.rel (%p755) target = $region68
        $region67: #{mlp_face_classifier.1} parent=63 // pred_region
          %p758 = scmp.lt.s32.totalorder %s21, 1
          %s759 = scalar_select %p758, %s21, 1
          %s760 = smul.addr %s759, 8
          %s761 = scalar_lea.vmem %s7, %s760
        $region68: #{mlp_face_classifier.1} parent=63 // pred_fallthru
          _
      $region64: #{mlp_face_classifier.1} parent=5 // pred_fallthru
        _
    $region6: #{mlp_face_classifier.1} parent=1 // loop_footer
      %s19 = sadd.s32 1, %s15
    $region7: #{mlp_face_classifier.1} parent=1 // loop_footer_branch
      %14 = sbr.rel target = $region3
    $region8: #{mlp_face_classifier.1} parent=1 // loop_exit
      _
    %762 = vsyncpa [#allocation3], 1
    %s763 = scalar_lea.sflag [#allocation3], 1
    %764 = vsyncpa %s763, 1
    %765 = vsyncpa [#allocation5], 1

</llo_original>
